<compile_context>
chip_gen: v7x
topology: tpu7x:2x2x1
jax: 0.10.0
libtpu: 0.0.40
codegen_flags: <defaults>
</compile_context>

<pallas_src>
from collections import OrderedDict

import numpy as np
import jax
import jax.numpy as jnp
from jax.experimental import pallas as pl
from jax.experimental.pallas import tpu as pltpu


NUM_STAGES = 4
COUT_PAD = 128        # lane-dense output channel padding (all stage couts <= 64)
MAX_BLOCK_M1 = 4096   # stage-1 rows per grid block (VMEM-friendly on v7x's 64 MiB)


# ----------------------------------------------------------------------------
# Fused Pallas kernel: 4 x (2x2 stride-2 conv as ONE packed-K matmul + bias+ReLU)
# ----------------------------------------------------------------------------
def _make_fused_kernel(chans):
    """chans = [cin, c1, c2, c3, c4]; returns the fused 4-stage kernel body."""

    def kernel(lhs_ref, w1_ref, w2_ref, w3_ref, w4_ref, bias_ref,
               o1_ref, o2_ref, o3_ref, o4_ref, x2_ref, x3_ref, x4_ref):
        w_refs = (w1_ref, w2_ref, w3_ref, w4_ref)
        o_refs = (o1_ref, o2_ref, o3_ref, o4_ref)
        x_refs = (lhs_ref, x2_ref, x3_ref, x4_ref)

        for s in range(NUM_STAGES):
            # One MXU pass per stage: K = 4*cin packed along the rhs sublane
            # axis (no zero-padded K), f32 accumulation on the MXU.
            y = jnp.dot(x_refs[s][...], w_refs[s][...],
                        preferred_element_type=jnp.float32)
            y = jnp.maximum(y + bias_ref[s:s + 1, :], 0.0)   # f32 bias+ReLU (v5e-safe)
            o_refs[s][...] = y.astype(jnp.bfloat16)          # lane-dense bf16 store

            if s + 1 < NUM_STAGES:
                c_out = chans[s + 1]
                m_next = o_refs[s + 1].shape[0]              # block-local next-stage rows
                x_next = x_refs[s + 1]
                if m_next % 8 == 0:
                    # Sublane-aligned: re-read the just-written bf16 output block
                    # (contiguous row slices + lane-offset stores) so the f32 `y`
                    # dies immediately -> bounded vreg/VMEM live range.
                    for c in range(4):
                        x_next[:, c * c_out:(c + 1) * c_out] = \
                            o_refs[s][c * m_next:(c + 1) * m_next, :c_out]
                else:
                    # Tiny tail stage: slice the live value instead (avoids
                    # unaligned sublane reads of the packed bf16 output ref).
                    y_bf = y.astype(jnp.bfloat16)
                    for c in range(4):
                        x_next[:, c * c_out:(c + 1) * c_out] = \
                            y_bf[c * m_next:(c + 1) * m_next, :c_out]

    return kernel


def _fused_backbone_call(lhs1, w_list, bias_stack, chans, block_m1):
    """lhs1: (M1, 4*cin) bf16 packed-K stage-1 operand; w_list: per-stage
       (4*cin_s, 128) bf16 rhs; bias_stack: (4,128) f32."""
    m1, k1 = lhs1.shape
    assert m1 % block_m1 == 0
    grid_n = m1 // block_m1
    out_rows = [m1 // (4 ** s) for s in range(NUM_STAGES)]
    blk_rows = [block_m1 // (4 ** s) for s in range(NUM_STAGES)]

    out_shape = tuple(jax.ShapeDtypeStruct((r, COUT_PAD), jnp.bfloat16)
                      for r in out_rows)
    in_specs = [pl.BlockSpec((block_m1, k1), lambda i: (i, 0))]
    in_specs += [pl.BlockSpec(w.shape, lambda i: (0, 0)) for w in w_list]
    in_specs += [pl.BlockSpec(bias_stack.shape, lambda i: (0, 0))]
    out_specs = tuple(pl.BlockSpec((r, COUT_PAD), lambda i: (i, 0))
                      for r in blk_rows)
    # Between-stage bf16 lhs scratch buffers (stage 2..4), block-local sizes.
    scratch_shapes = [pltpu.VMEM((blk_rows[s], 4 * chans[s]), jnp.bfloat16)
                      for s in range(1, NUM_STAGES)]

    return pl.pallas_call(
        _make_fused_kernel(chans),
        out_shape=out_shape,
        grid=(grid_n,),
        in_specs=in_specs,
        out_specs=out_specs,
        scratch_shapes=scratch_shapes,
        compiler_params=pltpu.CompilerParams(
            dimension_semantics=("parallel",)),   # independent row blocks -> both v7x TCs
    )(lhs1, *w_list, bias_stack)


# ----------------------------------------------------------------------------
# Block-local recursive row ordering + im2col gather plan (static numpy).
# ----------------------------------------------------------------------------
def _pick_anc_per_block(n_top, max_block_m1=MAX_BLOCK_M1):
    """# of coarsest-level pixels per grid block.  One block for small inputs;
    for large inputs pick a divisor of n_top keeping the stage-1 block at
    <= max_block_m1 rows with anc % 8 == 0 so every per-stage output block
    stays sublane-aligned."""
    rows1 = n_top * (4 ** (NUM_STAGES - 1))
    if rows1 <= max_block_m1:
        return n_top
    a = max_block_m1 // (4 ** (NUM_STAGES - 1))
    a -= a % 8
    while a >= 8:
        if n_top % a == 0:
            return a
        a -= 8
    return n_top


def _build_plan(n, h, w, anc_per_block):
    """Returns (rowidx, gidx).

    rowidx[s][b,y,x] (s=1..NUM_STAGES): row of stage-s output pixel (b,y,x) in
    the stage-s output matrix.  gidx[r, c]: flat input-pixel index of child
    c (=2*dy+dx) of the stage-1 output pixel stored at row r.

    Within every grid block (a contiguous run of `anc_per_block` coarsest-level
    pixels plus all their descendants) the 4 children of output pixel q at
    stage s+1 sit at block-local rows c*m_next + q of stage s, so the kernel's
    repack uses only contiguous, statically-offset slices.
    """
    hs, ws = h >> NUM_STAGES, w >> NUM_STAGES
    n_top = n * hs * ws
    assert n_top % anc_per_block == 0
    top = np.arange(n_top, dtype=np.int64).reshape(n, hs, ws)
    blks = top // anc_per_block
    locs = top % anc_per_block

    rowidx = [None] * (NUM_STAGES + 1)
    rowidx[NUM_STAGES] = blks * anc_per_block + locs
    for s in range(NUM_STAGES - 1, 0, -1):
        m_next_local = anc_per_block * (4 ** (NUM_STAGES - s - 1))
        cur_blk = np.zeros((n, h >> s, w >> s), dtype=np.int64)
        cur_loc = np.zeros((n, h >> s, w >> s), dtype=np.int64)
        for dy in range(2):
            for dx in range(2):
                c = 2 * dy + dx
                cur_blk[:, dy::2, dx::2] = blks
                cur_loc[:, dy::2, dx::2] = c * m_next_local + locs
        blks, locs = cur_blk, cur_loc
        rowidx[s] = blks * (4 * m_next_local) + locs

    # im2col gather indices for the stage-1 lhs (row order = rowidx[1]).
    hh, ww = h >> 1, w >> 1
    m1 = n * hh * ww
    r1 = rowidx[1].reshape(-1)
    gidx = np.zeros((m1, 4), dtype=np.int64)
    bi = np.arange(n)[:, None, None]
    yi = np.arange(hh)[None, :, None]
    xi = np.arange(ww)[None, None, :]
    for dy in range(2):
        for dx in range(2):
            c = 2 * dy + dx
            flat = (bi * h + (2 * yi + dy)) * w + (2 * xi + dx)   # (n, hh, ww)
            gidx[r1, c] = flat.reshape(-1)
    return rowidx, gidx


# ----------------------------------------------------------------------------
# Mask interpolation (F.interpolate, mode='nearest'): strided slice for exact
# integer factors, floor-index gather otherwise.
# ----------------------------------------------------------------------------
def interpolate_mask_nearest(mask_bool, out_h, out_w):
    n, h, w = mask_bool.shape
    if h % out_h == 0 and w % out_w == 0:
        return mask_bool[:, ::h // out_h, ::w // out_w]
    rows = (jnp.arange(out_h) * h) // out_h
    cols = (jnp.arange(out_w) * w) // out_w
    return mask_bool[:, rows][:, :, cols]


# ----------------------------------------------------------------------------
# Pure-JAX reference helper (space-to-depth formulation) for verification.
# ----------------------------------------------------------------------------
def _space_to_depth_2x2(x_nhwc):
    n, h, w, c = x_nhwc.shape
    x = x_nhwc.reshape(n, h // 2, 2, w // 2, 2, c)
    x = jnp.transpose(x, (0, 1, 3, 2, 4, 5))      # n, y, x, dy, dx, c
    return x.reshape(n, h // 2, w // 2, 4 * c)    # channel = (2*dy+dx)*c + ci


# ----------------------------------------------------------------------------
# BackboneBase equivalent
# ----------------------------------------------------------------------------
class BackboneBasePallas:
    def __init__(self, in_channels=4, return_interm_layers=True, seed=0):
        self.in_channels = in_channels
        self.return_interm_layers = return_interm_layers
        self.chans = [in_channels, 8, 16, 32, 64]
        self.num_channels = self.chans[-1]

        key = jax.random.PRNGKey(seed)
        self.weights = []                         # unpadded f32 (w [4*cin,cout], b [cout])
        for li in range(NUM_STAGES):
            key, kw, kb = jax.random.split(key, 3)
            cin, cout = self.chans[li], self.chans[li + 1]
            w = jax.random.normal(kw, (4 * cin, cout), jnp.float32) * 0.1
            b = jax.random.normal(kb, (cout,), jnp.float32) * 0.01
            self.weights.append((w, b))

        # Kernel constants: packed-K rhs per stage (4*cin, 128) bf16 — K is NOT
        # zero-padded (weight DMA ~512 KiB -> ~60 KiB), cout padded to 128 so
        # every output store stays lane-dense; single shared (4,128) f32 bias.
        self.w_packed = []
        bias_stack = jnp.zeros((NUM_STAGES, COUT_PAD), jnp.float32)
        for li, (w, b) in enumerate(self.weights):
            cin, cout = self.chans[li], self.chans[li + 1]
            wp = jnp.zeros((4 * cin, COUT_PAD), jnp.float32).at[:, :cout].set(w)
            self.w_packed.append(wp.astype(jnp.bfloat16))
            bias_stack = bias_stack.at[li, :cout].set(b)
        self.bias_stack = bias_stack
        # TODO(synk): requires_grad_ freezing logic is training-only; no
        # inference-time equivalent, omitted.

    # ------------------------------------------------------------------ forward
    def forward(self, tensors_nchw, mask=None):
        """tensors_nchw: [N,C,H,W] f32; mask: [N,H,W] bool or None.

        Returns OrderedDict name -> (feature [N,C',H',W'], mask [N,H',W'])
        mirroring NestedTensor(x, mask); if mask is None, features only."""
        x = jnp.transpose(tensors_nchw, (0, 2, 3, 1))        # NCHW -> NHWC
        n, h, w, cin = x.shape
        assert cin == self.in_channels
        assert h % (2 ** NUM_STAGES) == 0 and w % (2 ** NUM_STAGES) == 0

        n_top = n * (h >> NUM_STAGES) * (w >> NUM_STAGES)
        anc = _pick_anc_per_block(n_top)
        block_m1 = anc * (4 ** (NUM_STAGES - 1))
        rowidx, gidx = _build_plan(n, h, w, anc)

        # Single static im2col gather builds the stage-1 lhs directly in the
        # (M1, 4*cin) packed-K bf16 layout the kernel consumes.
        m1 = n * (h >> 1) * (w >> 1)
        x_rows = x.reshape(n * h * w, cin)
        lhs1 = jnp.take(x_rows, jnp.asarray(gidx.reshape(-1), dtype=jnp.int32),
                        axis=0)
        lhs1 = lhs1.reshape(m1, 4 * cin).astype(jnp.bfloat16)

        stage_outs = _fused_backbone_call(lhs1, self.w_packed, self.bias_stack,
                                          self.chans, block_m1)

        feats = []
        for s in range(1, NUM_STAGES + 1):
            hs, ws, cs = h >> s, w >> s, self.chans[s]
            o = stage_outs[s - 1][:, :cs]                     # slice channels BEFORE gather
            f = jnp.take(o, jnp.asarray(rowidx[s].reshape(-1), dtype=jnp.int32),
                         axis=0)
            f = f.reshape(n, hs, ws, cs)
            f = jnp.transpose(f, (0, 3, 1, 2)).astype(jnp.float32)   # NCHW f32 for parity
            feats.append(f)

        if self.return_interm_layers:
            selected = OrderedDict((str(i), feats[i]) for i in range(NUM_STAGES))
        else:
            selected = OrderedDict([('0', feats[-1])])

        out = OrderedDict()
        for name, f in selected.items():
            if mask is None:
                out[name] = f
            else:
                fh, fw = f.shape[-2:]
                out[name] = (f, interpolate_mask_nearest(mask, fh, fw))
        return out

    # ------------------------------------------------------- pure-JAX reference
    def reference_features(self, tensors_nchw):
        x = jnp.transpose(tensors_nchw, (0, 2, 3, 1))
        feats = []
        for (w, b) in self.weights:
            p = _space_to_depth_2x2(x)
            n, hh, ww, k = p.shape
            y = jnp.maximum(p.reshape(n * hh * ww, k) @ w + b, 0.0)
            x = y.reshape(n, hh, ww, -1)
            feats.append(x)
        if self.return_interm_layers:
            sel = OrderedDict((str(i), feats[i]) for i in range(NUM_STAGES))
        else:
            sel = OrderedDict([('0', feats[-1])])
        return OrderedDict((k, jnp.transpose(v, (0, 3, 1, 2))) for k, v in sel.items())


if __name__ == "__main__":
    key = jax.random.PRNGKey(0)
    k_x, _ = jax.random.split(key)

    N, C, H, W = 2, 4, 16, 16
    x = jax.random.normal(k_x, (N, C, H, W), jnp.float32)
    # Padding mask: True on the right/bottom padded region.
    mask = jnp.zeros((N, H, W), jnp.bool_)
    mask = mask.at[:, :, 12:].set(True)
    mask = mask.at[:, 12:, :].set(True)

    model = BackboneBasePallas(in_channels=C, return_interm_layers=True, seed=0)
    out = model.forward(x, mask)
    ref = model.reference_features(x)            # f32 reference (bf16 MXU tolerance)

    for name, (feat, m) in out.items():
        jax.block_until_ready(feat)
        jax.block_until_ready(m)
        assert feat.ndim == 4 and m.shape == feat.shape[:1] + feat.shape[2:], (
            name, feat.shape, m.shape)
        np.testing.assert_allclose(np.asarray(feat), np.asarray(ref[name]),
                                   rtol=5e-2, atol=5e-2)

    print("KERNEL_OK")
</pallas_src>

<mosaic_0001>
module attributes {stable_mosaic.version = 11 : i64} {
  func.func @kernel(%arg0: i32, %arg1: memref<128x16xbf16, #tpu.memory_space<vmem>>, %arg2: memref<16x128xbf16, #tpu.memory_space<vmem>>, %arg3: memref<32x128xbf16, #tpu.memory_space<vmem>>, %arg4: memref<64x128xbf16, #tpu.memory_space<vmem>>, %arg5: memref<128x128xbf16, #tpu.memory_space<vmem>>, %arg6: memref<4x128xf32, #tpu.memory_space<vmem>>, %arg7: memref<128x128xbf16, #tpu.memory_space<vmem>>, %arg8: memref<32x128xbf16, #tpu.memory_space<vmem>>, %arg9: memref<8x128xbf16, #tpu.memory_space<vmem>>, %arg10: memref<2x128xbf16, #tpu.memory_space<vmem>>, %arg11: memref<32x32xbf16, #tpu.memory_space<vmem>>, %arg12: memref<8x64xbf16, #tpu.memory_space<vmem>>, %arg13: memref<2x128xbf16, #tpu.memory_space<vmem>>) attributes {dimension_semantics = [#tpu.dimension_semantics<parallel>], iteration_bounds = array<i64: 1>, scalar_prefetch = 0 : i64, scratch_operands = 3 : i64, tpu.core_type = #tpu.core_type<tc>, window_params = [{transform_indices = @transform_0, window_bounds = array<i64: 128, 16>}, {pipeline_mode = #tpu.pipeline_mode<synchronous>, transform_indices = @transform_1, window_bounds = array<i64: 16, 128>}, {pipeline_mode = #tpu.pipeline_mode<synchronous>, transform_indices = @transform_2, window_bounds = array<i64: 32, 128>}, {pipeline_mode = #tpu.pipeline_mode<synchronous>, transform_indices = @transform_3, window_bounds = array<i64: 64, 128>}, {pipeline_mode = #tpu.pipeline_mode<synchronous>, transform_indices = @transform_4, window_bounds = array<i64: 128, 128>}, {pipeline_mode = #tpu.pipeline_mode<synchronous>, transform_indices = @transform_5, window_bounds = array<i64: 4, 128>}, {transform_indices = @transform_6, window_bounds = array<i64: 128, 128>}, {transform_indices = @transform_7, window_bounds = array<i64: 32, 128>}, {transform_indices = @transform_8, window_bounds = array<i64: 8, 128>}, {transform_indices = @transform_9, window_bounds = array<i64: 2, 128>}]} {
    %c0 = arith.constant 0 : index
    %c0_0 = arith.constant 0 : index
    %0 = vector.load %arg1[%c0, %c0_0] : memref<128x16xbf16, #tpu.memory_space<vmem>>, vector<128x16xbf16>
    %c0_1 = arith.constant 0 : index
    %c0_2 = arith.constant 0 : index
    %1 = vector.load %arg2[%c0_1, %c0_2] : memref<16x128xbf16, #tpu.memory_space<vmem>>, vector<16x128xbf16>
    %cst = arith.constant dense<0.000000e+00> : vector<128x128xf32>
    %2 = tpu.matmul %0, %1, %cst {dimension_numbers = #tpu.dot_dimension_numbers<[1], [0], [0], [1], [0, 0, 1, 1], [], []>} : vector<128x16xbf16>, vector<16x128xbf16>, vector<128x128xf32> -> vector<128x128xf32>
    %c0_3 = arith.constant 0 : index
    %c0_4 = arith.constant 0 : index
    %3 = vector.load %arg6[%c0_3, %c0_4] : memref<4x128xf32, #tpu.memory_space<vmem>>, vector<1x128xf32>
    %4 = vector.broadcast %3 : vector<1x128xf32> to vector<128x128xf32>
    %5 = arith.addf %2, %4 : vector<128x128xf32>
    %cst_5 = arith.constant 0.000000e+00 : f32
    %6 = vector.broadcast %cst_5 : f32 to vector<128x128xf32>
    %7 = arith.maximumf %5, %6 : vector<128x128xf32>
    %8 = arith.truncf %7 : vector<128x128xf32> to vector<128x128xbf16>
    %c0_6 = arith.constant 0 : index
    %c0_7 = arith.constant 0 : index
    %9 = vector.load %arg7[%c0_6, %c0_7] : memref<128x128xbf16, #tpu.memory_space<vmem>>, vector<128x128xbf16>
    tpu.vector_store %arg7[%c0_6, %c0_7], %8 {strides = array<i32>} : memref<128x128xbf16, #tpu.memory_space<vmem>>, vector<128x128xbf16>,
    %c0_8 = arith.constant 0 : index
    %c0_9 = arith.constant 0 : index
    %10 = vector.load %arg7[%c0_8, %c0_9] : memref<128x128xbf16, #tpu.memory_space<vmem>>, vector<32x8xbf16>
    %c0_10 = arith.constant 0 : index
    %c0_11 = arith.constant 0 : index
    %11 = vector.load %arg11[%c0_10, %c0_11] : memref<32x32xbf16, #tpu.memory_space<vmem>>, vector<32x8xbf16>
    tpu.vector_store %arg11[%c0_10, %c0_11], %10 {strides = array<i32>} : memref<32x32xbf16, #tpu.memory_space<vmem>>, vector<32x8xbf16>,
    %c32 = arith.constant 32 : index
    %c0_12 = arith.constant 0 : index
    %12 = vector.load %arg7[%c32, %c0_12] : memref<128x128xbf16, #tpu.memory_space<vmem>>, vector<32x8xbf16>
    %c0_13 = arith.constant 0 : index
    %c8 = arith.constant 8 : index
    %13 = vector.load %arg11[%c0_13, %c8] : memref<32x32xbf16, #tpu.memory_space<vmem>>, vector<32x8xbf16>
    tpu.vector_store %arg11[%c0_13, %c8], %12 {strides = array<i32>} : memref<32x32xbf16, #tpu.memory_space<vmem>>, vector<32x8xbf16>,
    %c64 = arith.constant 64 : index
    %c0_14 = arith.constant 0 : index
    %14 = vector.load %arg7[%c64, %c0_14] : memref<128x128xbf16, #tpu.memory_space<vmem>>, vector<32x8xbf16>
    %c0_15 = arith.constant 0 : index
    %c16 = arith.constant 16 : index
    %15 = vector.load %arg11[%c0_15, %c16] : memref<32x32xbf16, #tpu.memory_space<vmem>>, vector<32x8xbf16>
    tpu.vector_store %arg11[%c0_15, %c16], %14 {strides = array<i32>} : memref<32x32xbf16, #tpu.memory_space<vmem>>, vector<32x8xbf16>,
    %c96 = arith.constant 96 : index
    %c0_16 = arith.constant 0 : index
    %16 = vector.load %arg7[%c96, %c0_16] : memref<128x128xbf16, #tpu.memory_space<vmem>>, vector<32x8xbf16>
    %c0_17 = arith.constant 0 : index
    %c24 = arith.constant 24 : index
    %17 = vector.load %arg11[%c0_17, %c24] : memref<32x32xbf16, #tpu.memory_space<vmem>>, vector<32x8xbf16>
    tpu.vector_store %arg11[%c0_17, %c24], %16 {strides = array<i32>} : memref<32x32xbf16, #tpu.memory_space<vmem>>, vector<32x8xbf16>,
    %c0_18 = arith.constant 0 : index
    %c0_19 = arith.constant 0 : index
    %18 = vector.load %arg11[%c0_18, %c0_19] : memref<32x32xbf16, #tpu.memory_space<vmem>>, vector<32x32xbf16>
    %c0_20 = arith.constant 0 : index
    %c0_21 = arith.constant 0 : index
    %19 = vector.load %arg3[%c0_20, %c0_21] : memref<32x128xbf16, #tpu.memory_space<vmem>>, vector<32x128xbf16>
    %cst_22 = arith.constant dense<0.000000e+00> : vector<32x128xf32>
    %20 = tpu.matmul %18, %19, %cst_22 {dimension_numbers = #tpu.dot_dimension_numbers<[1], [0], [0], [1], [0, 0, 1, 1], [], []>} : vector<32x32xbf16>, vector<32x128xbf16>, vector<32x128xf32> -> vector<32x128xf32>
    %c1 = arith.constant 1 : index
    %c0_23 = arith.constant 0 : index
    %21 = vector.load %arg6[%c1, %c0_23] : memref<4x128xf32, #tpu.memory_space<vmem>>, vector<1x128xf32>
    %22 = vector.broadcast %21 : vector<1x128xf32> to vector<32x128xf32>
    %23 = arith.addf %20, %22 : vector<32x128xf32>
    %cst_24 = arith.constant 0.000000e+00 : f32
    %24 = vector.broadcast %cst_24 : f32 to vector<32x128xf32>
    %25 = arith.maximumf %23, %24 : vector<32x128xf32>
    %26 = arith.truncf %25 : vector<32x128xf32> to vector<32x128xbf16>
    %c0_25 = arith.constant 0 : index
    %c0_26 = arith.constant 0 : index
    %27 = vector.load %arg8[%c0_25, %c0_26] : memref<32x128xbf16, #tpu.memory_space<vmem>>, vector<32x128xbf16>
    tpu.vector_store %arg8[%c0_25, %c0_26], %26 {strides = array<i32>} : memref<32x128xbf16, #tpu.memory_space<vmem>>, vector<32x128xbf16>,
    %c0_27 = arith.constant 0 : index
    %c0_28 = arith.constant 0 : index
    %28 = vector.load %arg8[%c0_27, %c0_28] : memref<32x128xbf16, #tpu.memory_space<vmem>>, vector<8x16xbf16>
    %c0_29 = arith.constant 0 : index
    %c0_30 = arith.constant 0 : index
    %29 = vector.load %arg12[%c0_29, %c0_30] : memref<8x64xbf16, #tpu.memory_space<vmem>>, vector<8x16xbf16>
    tpu.vector_store %arg12[%c0_29, %c0_30], %28 {strides = array<i32>} : memref<8x64xbf16, #tpu.memory_space<vmem>>, vector<8x16xbf16>,
    %c8_31 = arith.constant 8 : index
    %c0_32 = arith.constant 0 : index
    %30 = vector.load %arg8[%c8_31, %c0_32] : memref<32x128xbf16, #tpu.memory_space<vmem>>, vector<8x16xbf16>
    %c0_33 = arith.constant 0 : index
    %c16_34 = arith.constant 16 : index
    %31 = vector.load %arg12[%c0_33, %c16_34] : memref<8x64xbf16, #tpu.memory_space<vmem>>, vector<8x16xbf16>
    tpu.vector_store %arg12[%c0_33, %c16_34], %30 {strides = array<i32>} : memref<8x64xbf16, #tpu.memory_space<vmem>>, vector<8x16xbf16>,
    %c16_35 = arith.constant 16 : index
    %c0_36 = arith.constant 0 : index
    %32 = vector.load %arg8[%c16_35, %c0_36] : memref<32x128xbf16, #tpu.memory_space<vmem>>, vector<8x16xbf16>
    %c0_37 = arith.constant 0 : index
    %c32_38 = arith.constant 32 : index
    %33 = vector.load %arg12[%c0_37, %c32_38] : memref<8x64xbf16, #tpu.memory_space<vmem>>, vector<8x16xbf16>
    tpu.vector_store %arg12[%c0_37, %c32_38], %32 {strides = array<i32>} : memref<8x64xbf16, #tpu.memory_space<vmem>>, vector<8x16xbf16>,
    %c24_39 = arith.constant 24 : index
    %c0_40 = arith.constant 0 : index
    %34 = vector.load %arg8[%c24_39, %c0_40] : memref<32x128xbf16, #tpu.memory_space<vmem>>, vector<8x16xbf16>
    %c0_41 = arith.constant 0 : index
    %c48 = arith.constant 48 : index
    %35 = vector.load %arg12[%c0_41, %c48] : memref<8x64xbf16, #tpu.memory_space<vmem>>, vector<8x16xbf16>
    tpu.vector_store %arg12[%c0_41, %c48], %34 {strides = array<i32>} : memref<8x64xbf16, #tpu.memory_space<vmem>>, vector<8x16xbf16>,
    %c0_42 = arith.constant 0 : index
    %c0_43 = arith.constant 0 : index
    %36 = vector.load %arg12[%c0_42, %c0_43] : memref<8x64xbf16, #tpu.memory_space<vmem>>, vector<8x64xbf16>
    %c0_44 = arith.constant 0 : index
    %c0_45 = arith.constant 0 : index
    %37 = vector.load %arg4[%c0_44, %c0_45] : memref<64x128xbf16, #tpu.memory_space<vmem>>, vector<64x128xbf16>
    %cst_46 = arith.constant dense<0.000000e+00> : vector<8x128xf32>
    %38 = tpu.matmul %36, %37, %cst_46 {dimension_numbers = #tpu.dot_dimension_numbers<[1], [0], [0], [1], [0, 0, 1, 1], [], []>} : vector<8x64xbf16>, vector<64x128xbf16>, vector<8x128xf32> -> vector<8x128xf32>
    %c2 = arith.constant 2 : index
    %c0_47 = arith.constant 0 : index
    %39 = vector.load %arg6[%c2, %c0_47] : memref<4x128xf32, #tpu.memory_space<vmem>>, vector<1x128xf32>
    %40 = vector.broadcast %39 : vector<1x128xf32> to vector<8x128xf32>
    %41 = arith.addf %38, %40 : vector<8x128xf32>
    %cst_48 = arith.constant 0.000000e+00 : f32
    %42 = vector.broadcast %cst_48 : f32 to vector<8x128xf32>
    %43 = arith.maximumf %41, %42 : vector<8x128xf32>
    %44 = arith.truncf %43 : vector<8x128xf32> to vector<8x128xbf16>
    %c0_49 = arith.constant 0 : index
    %c0_50 = arith.constant 0 : index
    %45 = vector.load %arg9[%c0_49, %c0_50] : memref<8x128xbf16, #tpu.memory_space<vmem>>, vector<8x128xbf16>
    tpu.vector_store %arg9[%c0_49, %c0_50], %44 {strides = array<i32>} : memref<8x128xbf16, #tpu.memory_space<vmem>>, vector<8x128xbf16>,
    %46 = arith.truncf %43 : vector<8x128xf32> to vector<8x128xbf16>
    %47 = vector.extract_strided_slice %46 {offsets = [0, 0], sizes = [2, 32], strides = [1, 1]} : vector<8x128xbf16> to vector<2x32xbf16>
    %c0_51 = arith.constant 0 : index
    %c0_52 = arith.constant 0 : index
    %48 = vector.load %arg13[%c0_51, %c0_52] : memref<2x128xbf16, #tpu.memory_space<vmem>>, vector<2x32xbf16>
    tpu.vector_store %arg13[%c0_51, %c0_52], %47 {strides = array<i32>} : memref<2x128xbf16, #tpu.memory_space<vmem>>, vector<2x32xbf16>,
    %49 = vector.extract_strided_slice %46 {offsets = [2, 0], sizes = [2, 32], strides = [1, 1]} : vector<8x128xbf16> to vector<2x32xbf16>
    %c0_53 = arith.constant 0 : index
    %c32_54 = arith.constant 32 : index
    %50 = vector.load %arg13[%c0_53, %c32_54] : memref<2x128xbf16, #tpu.memory_space<vmem>>, vector<2x32xbf16>
    tpu.vector_store %arg13[%c0_53, %c32_54], %49 {strides = array<i32>} : memref<2x128xbf16, #tpu.memory_space<vmem>>, vector<2x32xbf16>,
    %51 = vector.extract_strided_slice %46 {offsets = [4, 0], sizes = [2, 32], strides = [1, 1]} : vector<8x128xbf16> to vector<2x32xbf16>
    %c0_55 = arith.constant 0 : index
    %c64_56 = arith.constant 64 : index
    %52 = vector.load %arg13[%c0_55, %c64_56] : memref<2x128xbf16, #tpu.memory_space<vmem>>, vector<2x32xbf16>
    tpu.vector_store %arg13[%c0_55, %c64_56], %51 {strides = array<i32>} : memref<2x128xbf16, #tpu.memory_space<vmem>>, vector<2x32xbf16>,
    %53 = vector.extract_strided_slice %46 {offsets = [6, 0], sizes = [2, 32], strides = [1, 1]} : vector<8x128xbf16> to vector<2x32xbf16>
    %c0_57 = arith.constant 0 : index
    %c96_58 = arith.constant 96 : index
    %54 = vector.load %arg13[%c0_57, %c96_58] : memref<2x128xbf16, #tpu.memory_space<vmem>>, vector<2x32xbf16>
    tpu.vector_store %arg13[%c0_57, %c96_58], %53 {strides = array<i32>} : memref<2x128xbf16, #tpu.memory_space<vmem>>, vector<2x32xbf16>,
    %c0_59 = arith.constant 0 : index
    %c0_60 = arith.constant 0 : index
    %55 = vector.load %arg13[%c0_59, %c0_60] : memref<2x128xbf16, #tpu.memory_space<vmem>>, vector<2x128xbf16>
    %c0_61 = arith.constant 0 : index
    %c0_62 = arith.constant 0 : index
    %56 = vector.load %arg5[%c0_61, %c0_62] : memref<128x128xbf16, #tpu.memory_space<vmem>>, vector<128x128xbf16>
    %cst_63 = arith.constant dense<0.000000e+00> : vector<2x128xf32>
    %57 = tpu.matmul %55, %56, %cst_63 {dimension_numbers = #tpu.dot_dimension_numbers<[1], [0], [0], [1], [0, 0, 1, 1], [], []>} : vector<2x128xbf16>, vector<128x128xbf16>, vector<2x128xf32> -> vector<2x128xf32>
    %c3 = arith.constant 3 : index
    %c0_64 = arith.constant 0 : index
    %58 = vector.load %arg6[%c3, %c0_64] : memref<4x128xf32, #tpu.memory_space<vmem>>, vector<1x128xf32>
    %59 = vector.broadcast %58 : vector<1x128xf32> to vector<2x128xf32>
    %60 = arith.addf %57, %59 : vector<2x128xf32>
    %cst_65 = arith.constant 0.000000e+00 : f32
    %61 = vector.broadcast %cst_65 : f32 to vector<2x128xf32>
    %62 = arith.maximumf %60, %61 : vector<2x128xf32>
    %63 = arith.truncf %62 : vector<2x128xf32> to vector<2x128xbf16>
    %c0_66 = arith.constant 0 : index
    %c0_67 = arith.constant 0 : index
    %64 = vector.load %arg10[%c0_66, %c0_67] : memref<2x128xbf16, #tpu.memory_space<vmem>>, vector<2x128xbf16>
    tpu.vector_store %arg10[%c0_66, %c0_67], %63 {strides = array<i32>} : memref<2x128xbf16, #tpu.memory_space<vmem>>, vector<2x128xbf16>,
    return
  }
  func.func @transform_0(%arg0: i32) -> (i32, i32) {
    %c0_i32 = arith.constant 0 : i32
    %c0_i32_0 = arith.constant 0 : i32
    return %arg0, %c0_i32 : i32, i32
  }
  func.func @transform_1(%arg0: i32) -> (i32, i32) {
    %c0_i32 = arith.constant 0 : i32
    %c0_i32_0 = arith.constant 0 : i32
    %c0_i32_1 = arith.constant 0 : i32
    return %c0_i32, %c0_i32_0 : i32, i32
  }
  func.func @transform_2(%arg0: i32) -> (i32, i32) {
    %c0_i32 = arith.constant 0 : i32
    %c0_i32_0 = arith.constant 0 : i32
    %c0_i32_1 = arith.constant 0 : i32
    return %c0_i32, %c0_i32_0 : i32, i32
  }
  func.func @transform_3(%arg0: i32) -> (i32, i32) {
    %c0_i32 = arith.constant 0 : i32
    %c0_i32_0 = arith.constant 0 : i32
    %c0_i32_1 = arith.constant 0 : i32
    return %c0_i32, %c0_i32_0 : i32, i32
  }
  func.func @transform_4(%arg0: i32) -> (i32, i32) {
    %c0_i32 = arith.constant 0 : i32
    %c0_i32_0 = arith.constant 0 : i32
    %c0_i32_1 = arith.constant 0 : i32
    return %c0_i32, %c0_i32_0 : i32, i32
  }
  func.func @transform_5(%arg0: i32) -> (i32, i32) {
    %c0_i32 = arith.constant 0 : i32
    %c0_i32_0 = arith.constant 0 : i32
    %c0_i32_1 = arith.constant 0 : i32
    return %c0_i32, %c0_i32_0 : i32, i32
  }
  func.func @transform_6(%arg0: i32) -> (i32, i32) {
    %c0_i32 = arith.constant 0 : i32
    %c0_i32_0 = arith.constant 0 : i32
    return %arg0, %c0_i32 : i32, i32
  }
  func.func @transform_7(%arg0: i32) -> (i32, i32) {
    %c0_i32 = arith.constant 0 : i32
    %c0_i32_0 = arith.constant 0 : i32
    return %arg0, %c0_i32 : i32, i32
  }
  func.func @transform_8(%arg0: i32) -> (i32, i32) {
    %c0_i32 = arith.constant 0 : i32
    %c0_i32_0 = arith.constant 0 : i32
    return %arg0, %c0_i32 : i32, i32
  }
  func.func @transform_9(%arg0: i32) -> (i32, i32) {
    %c0_i32 = arith.constant 0 : i32
    %c0_i32_0 = arith.constant 0 : i32
    return %arg0, %c0_i32 : i32, i32
  }
}

</mosaic_0001>

<llo_original>
// kernel: tpu_custom_call.1
$region0: #{tpu_custom_call.1}
  #allocation0 [shape = 'u32[]', space=smem, size = 0x4, offset = 0x4, fixed_abs, tag = 'smem constant byte address 0x4 - core index']
  #allocation1 [shape = 'u32[144,128]{1,0:T(1,128)}', space=vmem, size = 0x12000, scoped, tag = 'internal scratch']
  #allocation2 [shape = 'bf16[32,32]{1,0:T(16,128)(2,1)}', space=vmem, size = 0x2000, scoped, tag = 'scratch operand']
  #allocation3 [shape = 'bf16[8,64]{1,0:T(8,128)(2,1)}', space=vmem, size = 0x800, scoped, tag = 'scratch operand']
  #allocation4 [shape = 'bf16[2,128]{1,0:T(2,128)(2,1)}', space=vmem, size = 0x200, scoped, tag = 'scratch operand']
  %s0 = inlined_call_operand.vmem [shape: bf16[128,16], index: 0, kind: input, shape index: {}]
  %s1 = inlined_call_operand.hbm [shape: bf16[16,128], index: 1, kind: input, shape index: {}]
  %s2 = inlined_call_operand.vmem [shape: bf16[32,128], index: 2, kind: input, shape index: {}]
  %s3 = inlined_call_operand.hbm [shape: bf16[64,128], index: 3, kind: input, shape index: {}]
  %s4 = inlined_call_operand.vmem [shape: bf16[128,128], index: 4, kind: input, shape index: {}]
  %s5 = inlined_call_operand.vmem [shape: f32[4,128], index: 5, kind: input, shape index: {}]
  %s6 = inlined_call_operand.hbm [shape: bf16[128,128], index: 6, kind: output, shape index: {0}]
  %s7 = inlined_call_operand.hbm [shape: bf16[32,128], index: 7, kind: output, shape index: {1}]
  %s8 = inlined_call_operand.hbm [shape: bf16[8,128], index: 8, kind: output, shape index: {2}]
  %s9 = inlined_call_operand.hbm [shape: bf16[2,128], index: 9, kind: output, shape index: {3}]
  %10 = xla_tuple %s6, %s7, %s8, %s9
  %s11 = sld [smem:[#allocation0]]
  $region66: #{tpu_custom_call.1} parent=0
    _
  %s13 = ssub.s32 1, %s11
  %s14 = scalar_select 0, %s13, %s11
  $region1: #{tpu_custom_call.1} parent=0
    #allocation5 [shape = 'u8[4096]{0}', space=vmem, size = 0x1000, scoped, tag = 'input window, operand 1, single buffered']
    #allocation6 [shape = 's32[1]{0}', space=sflag, size = 0x4, scoped, tag = 'scoped memory for tpu_custom_call.1']
    #allocation7 [shape = 's32[1]{0}', space=sflag, size = 0x4, scoped, tag = 'scoped memory for tpu_custom_call.1']
    #allocation8 [shape = 'u8[16384]{0}', space=vmem, size = 0x4000, scoped, tag = 'input window, operand 3, single buffered']
    #allocation9 [shape = 's32[1]{0}', space=sflag, size = 0x4, scoped, tag = 'scoped memory for tpu_custom_call.1']
    #allocation10 [shape = 'u8[32768]{0}', space=vmem, size = 0x8000, scoped, tag = 'output window, operand 0, single buffered']
    #allocation11 [shape = 'u8[8192]{0}', space=vmem, size = 0x2000, scoped, tag = 'output window, operand 1, single buffered']
    #allocation12 [shape = 's32[1]{0}', space=sflag, size = 0x4, scoped, tag = 'scoped memory for tpu_custom_call.1']
    #allocation13 [shape = 'u8[2048]{0}', space=vmem, size = 0x800, scoped, tag = 'output window, operand 2, single buffered']
    #allocation14 [shape = 'u8[512]{0}', space=vmem, size = 0x400, scoped, tag = 'output window, operand 3, single buffered']
    #allocation15 [shape = 's32[1]{0}', space=sflag, size = 0x4, scoped, tag = 'scoped memory for tpu_custom_call.1']
    %15 = vsyncpa [#allocation6], 0
    %16 = vsyncpa [#allocation9], 0
    %17 = vsyncpa [#allocation7], 0
    %18 = vsyncpa [#allocation12], 0
    %19 = vsyncpa [#allocation15], 0
    // Predicated region
    $region2: #{tpu_custom_call.1} parent=1 // pred_check
      _
    $region3: #{tpu_custom_call.1} parent=1 // pred_check_branch
      %21 = sbr.rel (0) target = $region5
    $region4: #{tpu_custom_call.1} parent=1 // pred_region
      _
    $region5: #{tpu_custom_call.1} parent=1 // pred_fallthru
      _
    // Predicated region
    $region6: #{tpu_custom_call.1} parent=1 // pred_check
      _
    $region7: #{tpu_custom_call.1} parent=1 // pred_check_branch
      %23 = sbr.rel (0) target = $region9
    $region8: #{tpu_custom_call.1} parent=1 // pred_region
      %s25 = ssub.s32 128, 128
      %26 = vsyncadd [#allocation6], %s25
      %s27 = sshll.u32 [#allocation5], 4
      %s28 = int_to_ptr.vmem [resolvable:$true] %s27
      %33 = dma.hbm_to_vmem [thread:$0]  %s1, 128, %s28, [#allocation6], 64, 64, 4
    $region9: #{tpu_custom_call.1} parent=1 // pred_fallthru
      _
    // Predicated region
    $region10: #{tpu_custom_call.1} parent=1 // pred_check
      _
    $region11: #{tpu_custom_call.1} parent=1 // pred_check_branch
      %35 = sbr.rel (0) target = $region13
    $region12: #{tpu_custom_call.1} parent=1 // pred_region
      _
    $region13: #{tpu_custom_call.1} parent=1 // pred_fallthru
      _
    // Predicated region
    $region14: #{tpu_custom_call.1} parent=1 // pred_check
      _
    $region15: #{tpu_custom_call.1} parent=1 // pred_check_branch
      %37 = sbr.rel (0) target = $region17
    $region16: #{tpu_custom_call.1} parent=1 // pred_region
      %s39 = ssub.s32 512, 512
      %40 = vsyncadd [#allocation9], %s39
      %s41 = sshll.u32 [#allocation8], 4
      %s42 = int_to_ptr.vmem [resolvable:$true] %s41
      %47 = dma.hbm_to_vmem [thread:$0]  %s3, 512, %s42, [#allocation9], 64, 64, 4
    $region17: #{tpu_custom_call.1} parent=1 // pred_fallthru
      _
    // Predicated region
    $region18: #{tpu_custom_call.1} parent=1 // pred_check
      _
    $region19: #{tpu_custom_call.1} parent=1 // pred_check_branch
      %49 = sbr.rel (0) target = $region21
    $region20: #{tpu_custom_call.1} parent=1 // pred_region
      _
    $region21: #{tpu_custom_call.1} parent=1 // pred_fallthru
      _
    // Predicated region
    $region22: #{tpu_custom_call.1} parent=1 // pred_check
      _
    $region23: #{tpu_custom_call.1} parent=1 // pred_check_branch
      %51 = sbr.rel (0) target = $region25
    $region24: #{tpu_custom_call.1} parent=1 // pred_region
      _
    $region25: #{tpu_custom_call.1} parent=1 // pred_fallthru
      _
    // Predicated region
    $region26: #{tpu_custom_call.1} parent=1 // pred_check
      _
    $region27: #{tpu_custom_call.1} parent=1 // pred_check_branch
      %53 = sbr.rel (0) target = $region29
    $region28: #{tpu_custom_call.1} parent=1 // pred_region
      %54 = dma.done [#allocation6], 128
    $region29: #{tpu_custom_call.1} parent=1 // pred_fallthru
      _
    // Predicated region
    $region30: #{tpu_custom_call.1} parent=1 // pred_check
      _
    $region31: #{tpu_custom_call.1} parent=1 // pred_check_branch
      %56 = sbr.rel (0) target = $region33
    $region32: #{tpu_custom_call.1} parent=1 // pred_region
      %57 = dma.done [#allocation9], 512
    $region33: #{tpu_custom_call.1} parent=1 // pred_fallthru
      _
    %v59 = vld [vmem:[%s0] sm:$0xf]
    %v60 = vld [vmem:[%s0 + $0x4] sm:$0xf]
    %v61 = vld [vmem:[%s0 + $0x8] sm:$0xf]
    %v62 = vld [vmem:[%s0 + $0xc] sm:$0xf]
    %v63 = vld [vmem:[%s0 + $0x10] sm:$0xf]
    %v64 = vld [vmem:[%s0 + $0x14] sm:$0xf]
    %v65 = vld [vmem:[%s0 + $0x18] sm:$0xf]
    %v66 = vld [vmem:[%s0 + $0x1c] sm:$0xf]
    %v67 = vld [vmem:[%s0 + $0x20] sm:$0xf]
    %v68 = vld [vmem:[%s0 + $0x24] sm:$0xf]
    %v69 = vld [vmem:[%s0 + $0x28] sm:$0xf]
    %v70 = vld [vmem:[%s0 + $0x2c] sm:$0xf]
    %v71 = vld [vmem:[%s0 + $0x30] sm:$0xf]
    %v72 = vld [vmem:[%s0 + $0x34] sm:$0xf]
    %v73 = vld [vmem:[%s0 + $0x38] sm:$0xf]
    %v74 = vld [vmem:[%s0 + $0x3c] sm:$0xf]
    %v75 = vld [vmem:[#allocation5] sm:$0xf]
    %v76 = vld [vmem:[#allocation5 + $0x4] sm:$0xf]
    %v77 = vld [vmem:[%s5] sm:$0x1]
    %v78 = vlaneseq
    %v79 = vshrl.u32 %v78, 7
    %v80 = vsub.s32 0, %v79
    %v81 = vrot.slane %v77, %v80
    %v98 = vunpack.c.l.b16 %v59
    %v99 = vunpack.c.l.b16 %v60
    %v100 = vunpack.c.l.b16 %v61
    %v101 = vunpack.c.l.b16 %v62
    %v102 = vunpack.c.l.b16 %v63
    %v103 = vunpack.c.l.b16 %v64
    %v104 = vunpack.c.l.b16 %v65
    %v105 = vunpack.c.l.b16 %v66
    %v106 = vunpack.c.l.b16 %v67
    %v107 = vunpack.c.l.b16 %v68
    %v108 = vunpack.c.l.b16 %v69
    %v109 = vunpack.c.l.b16 %v70
    %v110 = vunpack.c.l.b16 %v71
    %v111 = vunpack.c.l.b16 %v72
    %v112 = vunpack.c.l.b16 %v73
    %v113 = vunpack.c.l.b16 %v74
    %v114 = vpack.c.b16 %v99, %v98
    %v115 = vpack.c.b16 %v101, %v100
    %v116 = vpack.c.b16 %v103, %v102
    %v117 = vpack.c.b16 %v105, %v104
    %v118 = vpack.c.b16 %v107, %v106
    %v119 = vpack.c.b16 %v109, %v108
    %v120 = vpack.c.b16 %v111, %v110
    %v121 = vpack.c.b16 %v113, %v112
    %v124 = vunpack.c.l.b16 %v75
    %v125 = vunpack.c.l.b16 %v76
    %v126 = vpack.c.b16 %v125, %v124
    %vm128 = vcmask 130048
    %v130 = vsel %vm128, %v114, 0
    %v133 = vsel %vm128, %v115, 0
    %v136 = vsel %vm128, %v116, 0
    %v139 = vsel %vm128, %v117, 0
    %v142 = vsel %vm128, %v118, 0
    %v145 = vsel %vm128, %v119, 0
    %v148 = vsel %vm128, %v120, 0
    %v151 = vsel %vm128, %v121, 0
    %153 = vmatprep.subr.bf16.mxu0 0
    %154 = vmatpush1.bf16.msra.mxu0 %v126
    %155 = vmatprep.subr.bf16.mxu0 0
    %156 = vmatpush1.bf16.msra.mxu0 0
    %157 = vmatprep.subr.bf16.mxu0 0
    %158 = vmatpush1.bf16.msra.mxu0 0
    %159 = vmatprep.subr.bf16.mxu0 0
    %160 = vmatpush1.bf16.msra.mxu0 0
    %161 = vmatprep.subr.bf16.mxu0 0
    %162 = vmatpush1.bf16.msra.mxu0 0
    %163 = vmatprep.subr.bf16.mxu0 0
    %164 = vmatpush1.bf16.msra.mxu0 0
    %165 = vmatprep.subr.bf16.mxu0 0
    %166 = vmatpush1.bf16.msra.mxu0 0
    %167 = vmatprep.subr.bf16.mxu0 0
    %168 = vmatpush1.bf16.msra.mxu0 0
    %169 = vmatprep.subr.bf16.mxu0 0
    %170 = vmatpush1.bf16.msra.mxu0 0
    %171 = vmatprep.subr.bf16.mxu0 0
    %172 = vmatpush1.bf16.msra.mxu0 0
    %173 = vmatprep.subr.bf16.mxu0 0
    %174 = vmatpush1.bf16.msra.mxu0 0
    %175 = vmatprep.subr.bf16.mxu0 0
    %176 = vmatpush1.bf16.msra.mxu0 0
    %177 = vmatprep.subr.bf16.mxu0 0
    %178 = vmatpush1.bf16.msra.mxu0 0
    %179 = vmatprep.subr.bf16.mxu0 0
    %180 = vmatpush1.bf16.msra.mxu0 0
    %181 = vmatprep.subr.bf16.mxu0 0
    %182 = vmatpush1.bf16.msra.mxu0 0
    %183 = vmatprep.subr.bf16.mxu0 0
    %184 = vmatpush1.bf16.msra.mxu0 0
    %185 = vmatprep.mubr.bf16.mxu0 0
    %186 = vmatmul.mubr.bf16.gmra.mrb[0].mxu0 %v130
    %v187 = vpop.f32.mrb[0].mxu0
    %v188 = vadd.f32 %v81, %v187
    %v189 = vpop.f32.mrb[0].mxu0
    %v190 = vpop.f32.mrb[0].mxu0
    %v191 = vadd.f32 %v81, %v190
    %v192 = vpop.f32.mrb[0].mxu0
    %193 = vmatprep.mubr.bf16.mxu0 0
    %194 = vmatmul.mubr.bf16.gmra.mrb[0].mxu0 %v133
    %v195 = vpop.f32.mrb[0].mxu0
    %v196 = vadd.f32 %v81, %v195
    %v197 = vpop.f32.mrb[0].mxu0
    %v198 = vpop.f32.mrb[0].mxu0
    %v199 = vadd.f32 %v81, %v198
    %v200 = vpop.f32.mrb[0].mxu0
    %201 = vmatprep.mubr.bf16.mxu0 0
    %202 = vmatmul.mubr.bf16.gmra.mrb[0].mxu0 %v136
    %v203 = vpop.f32.mrb[0].mxu0
    %v204 = vadd.f32 %v81, %v203
    %v205 = vpop.f32.mrb[0].mxu0
    %v206 = vpop.f32.mrb[0].mxu0
    %v207 = vadd.f32 %v81, %v206
    %v208 = vpop.f32.mrb[0].mxu0
    %209 = vmatprep.mubr.bf16.mxu0 0
    %210 = vmatmul.mubr.bf16.gmra.mrb[0].mxu0 %v139
    %v211 = vpop.f32.mrb[0].mxu0
    %v212 = vadd.f32 %v81, %v211
    %v213 = vpop.f32.mrb[0].mxu0
    %v214 = vpop.f32.mrb[0].mxu0
    %v215 = vadd.f32 %v81, %v214
    %v216 = vpop.f32.mrb[0].mxu0
    %217 = vmatprep.mubr.bf16.mxu0 0
    %218 = vmatmul.mubr.bf16.gmra.mrb[0].mxu0 %v142
    %v219 = vpop.f32.mrb[0].mxu0
    %v220 = vadd.f32 %v81, %v219
    %v221 = vpop.f32.mrb[0].mxu0
    %v222 = vpop.f32.mrb[0].mxu0
    %v223 = vadd.f32 %v81, %v222
    %v224 = vpop.f32.mrb[0].mxu0
    %225 = vmatprep.mubr.bf16.mxu0 0
    %226 = vmatmul.mubr.bf16.gmra.mrb[0].mxu0 %v145
    %v227 = vpop.f32.mrb[0].mxu0
    %v228 = vadd.f32 %v81, %v227
    %v229 = vpop.f32.mrb[0].mxu0
    %v230 = vpop.f32.mrb[0].mxu0
    %v231 = vadd.f32 %v81, %v230
    %v232 = vpop.f32.mrb[0].mxu0
    %233 = vmatprep.mubr.bf16.mxu0 0
    %234 = vmatmul.mubr.bf16.gmra.mrb[0].mxu0 %v148
    %v235 = vpop.f32.mrb[0].mxu0
    %v236 = vadd.f32 %v81, %v235
    %v237 = vpop.f32.mrb[0].mxu0
    %v238 = vpop.f32.mrb[0].mxu0
    %v239 = vadd.f32 %v81, %v238
    %v240 = vpop.f32.mrb[0].mxu0
    %241 = vmatprep.mubr.bf16.mxu0 0
    %242 = vmatmul.mubr.bf16.gmra.mrb[0].mxu0 %v151
    %v243 = vpop.f32.mrb[0].mxu0
    %v244 = vadd.f32 %v81, %v243
    %v245 = vpop.f32.mrb[0].mxu0
    %v246 = vpop.f32.mrb[0].mxu0
    %v247 = vadd.f32 %v81, %v246
    %v248 = vpop.f32.mrb[0].mxu0
    %249 = vdwg.mxu0
    %v250 = vmax.f32 %v188, 0.0
    %v251 = vmax.f32 %v191, 0.0
    %v252 = vmax.f32 %v196, 0.0
    %v253 = vmax.f32 %v199, 0.0
    %v254 = vmax.f32 %v204, 0.0
    %v255 = vmax.f32 %v207, 0.0
    %v256 = vmax.f32 %v212, 0.0
    %v257 = vmax.f32 %v215, 0.0
    %v258 = vmax.f32 %v220, 0.0
    %v259 = vmax.f32 %v223, 0.0
    %v260 = vmax.f32 %v228, 0.0
    %v261 = vmax.f32 %v231, 0.0
    %v262 = vmax.f32 %v236, 0.0
    %v263 = vmax.f32 %v239, 0.0
    %v264 = vmax.f32 %v244, 0.0
    %v265 = vmax.f32 %v247, 0.0
    %v266 = vpack.c.bf16 %v251, %v250
    %v267 = vpack.c.bf16 %v253, %v252
    %v268 = vpack.c.bf16 %v255, %v254
    %v269 = vpack.c.bf16 %v257, %v256
    %v270 = vpack.c.bf16 %v259, %v258
    %v271 = vpack.c.bf16 %v261, %v260
    %v272 = vpack.c.bf16 %v263, %v262
    %v273 = vpack.c.bf16 %v265, %v264
    %v282 = vunpack.c.l.b16 %v266
    %v283 = vunpack.c.h.b16 %v266
    %v284 = vunpack.c.l.b16 %v267
    %v285 = vunpack.c.h.b16 %v267
    %v286 = vunpack.c.l.b16 %v268
    %v287 = vunpack.c.h.b16 %v268
    %v288 = vunpack.c.l.b16 %v269
    %v289 = vunpack.c.h.b16 %v269
    %v290 = vunpack.c.l.b16 %v270
    %v291 = vunpack.c.h.b16 %v270
    %v292 = vunpack.c.l.b16 %v271
    %v293 = vunpack.c.h.b16 %v271
    %v294 = vunpack.c.l.b16 %v272
    %v295 = vunpack.c.h.b16 %v272
    %v296 = vunpack.c.l.b16 %v273
    %v297 = vunpack.c.h.b16 %v273
    %v298 = vpack.c.b16 %v282, %v282
    %v299 = vpack.c.b16 %v283, %v283
    %v300 = vpack.c.b16 %v284, %v284
    %v301 = vpack.c.b16 %v285, %v285
    %v302 = vpack.c.b16 %v286, %v286
    %v303 = vpack.c.b16 %v287, %v287
    %v304 = vpack.c.b16 %v288, %v288
    %v305 = vpack.c.b16 %v289, %v289
    %v306 = vpack.c.b16 %v290, %v290
    %v307 = vpack.c.b16 %v291, %v291
    %v308 = vpack.c.b16 %v292, %v292
    %v309 = vpack.c.b16 %v293, %v293
    %v310 = vpack.c.b16 %v294, %v294
    %v311 = vpack.c.b16 %v295, %v295
    %v312 = vpack.c.b16 %v296, %v296
    %v313 = vpack.c.b16 %v297, %v297
    %330 = vst [vmem:[#allocation10] sm:$0xf] %v298
    %331 = vst [vmem:[#allocation10 + $0x4] sm:$0xf] %v299
    %332 = vst [vmem:[#allocation10 + $0x8] sm:$0xf] %v300
    %333 = vst [vmem:[#allocation10 + $0xc] sm:$0xf] %v301
    %334 = vst [vmem:[#allocation10 + $0x10] sm:$0xf] %v302
    %335 = vst [vmem:[#allocation10 + $0x14] sm:$0xf] %v303
    %336 = vst [vmem:[#allocation10 + $0x18] sm:$0xf] %v304
    %337 = vst [vmem:[#allocation10 + $0x1c] sm:$0xf] %v305
    %338 = vst [vmem:[#allocation10 + $0x20] sm:$0xf] %v306
    %339 = vst [vmem:[#allocation10 + $0x24] sm:$0xf] %v307
    %340 = vst [vmem:[#allocation10 + $0x28] sm:$0xf] %v308
    %341 = vst [vmem:[#allocation10 + $0x2c] sm:$0xf] %v309
    %342 = vst [vmem:[#allocation10 + $0x30] sm:$0xf] %v310
    %343 = vst [vmem:[#allocation10 + $0x34] sm:$0xf] %v311
    %344 = vst [vmem:[#allocation10 + $0x38] sm:$0xf] %v312
    %345 = vst [vmem:[#allocation10 + $0x3c] sm:$0xf] %v313
    %v346 = vld [vmem:[#allocation10] sm:$0xf]
    %v347 = vld [vmem:[#allocation10 + $0x4] sm:$0xf]
    %v348 = vld [vmem:[#allocation10 + $0x8] sm:$0xf]
    %v349 = vld [vmem:[#allocation10 + $0xc] sm:$0xf]
    %v354 = vunpack.c.l.b16 %v346
    %v355 = vunpack.c.l.b16 %v347
    %v356 = vunpack.c.l.b16 %v348
    %v357 = vunpack.c.l.b16 %v349
    %v358 = vpack.c.b16 %v355, %v354
    %v359 = vpack.c.b16 %v357, %v356
    %vm362 = vcmask 64512
    %363 = vst.msk [vmem:[#allocation2] sm:$0xff] %vm362, %v358
    %364 = vst.msk [vmem:[#allocation2 + $0x8] sm:$0xff] %vm362, %v359
    %v365 = vld [vmem:[#allocation10 + $0x10] sm:$0xf]
    %v366 = vld [vmem:[#allocation10 + $0x14] sm:$0xf]
    %v367 = vld [vmem:[#allocation10 + $0x18] sm:$0xf]
    %v368 = vld [vmem:[#allocation10 + $0x1c] sm:$0xf]
    %v373 = vunpack.c.l.b16 %v365
    %v374 = vunpack.c.l.b16 %v366
    %v375 = vunpack.c.l.b16 %v367
    %v376 = vunpack.c.l.b16 %v368
    %v377 = vpack.c.b16 %v374, %v373
    %v378 = vpack.c.b16 %v376, %v375
    %379 = vrot.lane.b32.xlu0 %v377, 8
    %v380 = vpop.permute.xlu0 %379
    %381 = vrot.lane.b32.xlu0 %v378, 8
    %v382 = vpop.permute.xlu0 %381
    %vm385 = vcmask 130112
    %386 = vst.msk [vmem:[#allocation2] sm:$0xff] %vm385, %v380
    %387 = vst.msk [vmem:[#allocation2 + $0x8] sm:$0xff] %vm385, %v382
    %v388 = vld [vmem:[#allocation10 + $0x20] sm:$0xf]
    %v389 = vld [vmem:[#allocation10 + $0x24] sm:$0xf]
    %v390 = vld [vmem:[#allocation10 + $0x28] sm:$0xf]
    %v391 = vld [vmem:[#allocation10 + $0x2c] sm:$0xf]
    %v396 = vunpack.c.l.b16 %v388
    %v397 = vunpack.c.l.b16 %v389
    %v398 = vunpack.c.l.b16 %v390
    %v399 = vunpack.c.l.b16 %v391
    %v400 = vpack.c.b16 %v397, %v396
    %v401 = vpack.c.b16 %v399, %v398
    %402 = vrot.lane.b32.xlu0 %v400, 16
    %v403 = vpop.permute.xlu0 %402
    %404 = vrot.lane.b32.xlu0 %v401, 16
    %v405 = vpop.permute.xlu0 %404
    %vm408 = vcmask 195712
    %409 = vst.msk [vmem:[#allocation2] sm:$0xff] %vm408, %v403
    %410 = vst.msk [vmem:[#allocation2 + $0x8] sm:$0xff] %vm408, %v405
    %v411 = vld [vmem:[#allocation10 + $0x30] sm:$0xf]
    %v412 = vld [vmem:[#allocation10 + $0x34] sm:$0xf]
    %v413 = vld [vmem:[#allocation10 + $0x38] sm:$0xf]
    %v414 = vld [vmem:[#allocation10 + $0x3c] sm:$0xf]
    %v419 = vunpack.c.l.b16 %v411
    %v420 = vunpack.c.l.b16 %v412
    %v421 = vunpack.c.l.b16 %v413
    %v422 = vunpack.c.l.b16 %v414
    %v423 = vpack.c.b16 %v420, %v419
    %v424 = vpack.c.b16 %v422, %v421
    %425 = vrot.lane.b32.xlu0 %v423, 24
    %v426 = vpop.permute.xlu0 %425
    %427 = vrot.lane.b32.xlu0 %v424, 24
    %v428 = vpop.permute.xlu0 %427
    %vm431 = vcmask 261312
    %432 = vst.msk [vmem:[#allocation2] sm:$0xff] %vm431, %v426
    %433 = vst.msk [vmem:[#allocation2 + $0x8] sm:$0xff] %vm431, %v428
    %v434 = vld [vmem:[#allocation2] sm:$0xff]
    %v435 = vld [vmem:[#allocation2 + $0x8] sm:$0xff]
    %v436 = vld [vmem:[%s2] sm:$0xf]
    %v437 = vld [vmem:[%s2 + $0x4] sm:$0xf]
    %v438 = vld [vmem:[%s2 + $0x8] sm:$0xf]
    %v439 = vld [vmem:[%s2 + $0xc] sm:$0xf]
    %v440 = vld [vmem:[%s5 + $0x1] sm:$0x1]
    %v441 = vlaneseq
    %v442 = vshrl.u32 %v441, 7
    %v443 = vsub.s32 0, %v442
    %v444 = vrot.slane %v440, %v443
    %v449 = vunpack.c.l.b16 %v436
    %v450 = vunpack.c.l.b16 %v437
    %v451 = vunpack.c.l.b16 %v438
    %v452 = vunpack.c.l.b16 %v439
    %v453 = vpack.c.b16 %v450, %v449
    %v454 = vpack.c.b16 %v452, %v451
    %vm457 = vcmask 261120
    %v459 = vsel %vm457, %v434, 0
    %v462 = vsel %vm457, %v435, 0
    %464 = vmatprep.subr.bf16.mxu0 0
    %465 = vmatpush1.bf16.msra.mxu0 %v453
    %466 = vmatprep.subr.bf16.mxu0 0
    %467 = vmatpush1.bf16.msra.mxu0 %v454
    %468 = vmatprep.subr.bf16.mxu0 0
    %469 = vmatpush1.bf16.msra.mxu0 0
    %470 = vmatprep.subr.bf16.mxu0 0
    %471 = vmatpush1.bf16.msra.mxu0 0
    %472 = vmatprep.subr.bf16.mxu0 0
    %473 = vmatpush1.bf16.msra.mxu0 0
    %474 = vmatprep.subr.bf16.mxu0 0
    %475 = vmatpush1.bf16.msra.mxu0 0
    %476 = vmatprep.subr.bf16.mxu0 0
    %477 = vmatpush1.bf16.msra.mxu0 0
    %478 = vmatprep.subr.bf16.mxu0 0
    %479 = vmatpush1.bf16.msra.mxu0 0
    %480 = vmatprep.subr.bf16.mxu0 0
    %481 = vmatpush1.bf16.msra.mxu0 0
    %482 = vmatprep.subr.bf16.mxu0 0
    %483 = vmatpush1.bf16.msra.mxu0 0
    %484 = vmatprep.subr.bf16.mxu0 0
    %485 = vmatpush1.bf16.msra.mxu0 0
    %486 = vmatprep.subr.bf16.mxu0 0
    %487 = vmatpush1.bf16.msra.mxu0 0
    %488 = vmatprep.subr.bf16.mxu0 0
    %489 = vmatpush1.bf16.msra.mxu0 0
    %490 = vmatprep.subr.bf16.mxu0 0
    %491 = vmatpush1.bf16.msra.mxu0 0
    %492 = vmatprep.subr.bf16.mxu0 0
    %493 = vmatpush1.bf16.msra.mxu0 0
    %494 = vmatprep.subr.bf16.mxu0 0
    %495 = vmatpush1.bf16.msra.mxu0 0
    %496 = vmatprep.mubr.bf16.mxu0 0
    %497 = vmatmul.mubr.bf16.gmra.mrb[0].mxu0 %v459
    %v498 = vpop.f32.mrb[0].mxu0
    %v499 = vadd.f32 %v444, %v498
    %v500 = vpop.f32.mrb[0].mxu0
    %v501 = vpop.f32.mrb[0].mxu0
    %v502 = vadd.f32 %v444, %v501
    %v503 = vpop.f32.mrb[0].mxu0
    %504 = vmatprep.mubr.bf16.mxu0 0
    %505 = vmatmul.mubr.bf16.gmra.mrb[0].mxu0 %v462
    %v506 = vpop.f32.mrb[0].mxu0
    %v507 = vadd.f32 %v444, %v506
    %v508 = vpop.f32.mrb[0].mxu0
    %v509 = vpop.f32.mrb[0].mxu0
    %v510 = vadd.f32 %v444, %v509
    %v511 = vpop.f32.mrb[0].mxu0
    %512 = vdwg.mxu0
    %v513 = vmax.f32 %v499, 0.0
    %v514 = vmax.f32 %v502, 0.0
    %v515 = vmax.f32 %v507, 0.0
    %v516 = vmax.f32 %v510, 0.0
    %v517 = vpack.c.bf16 %v514, %v513
    %v518 = vpack.c.bf16 %v516, %v515
    %v521 = vunpack.c.l.b16 %v517
    %v522 = vunpack.c.h.b16 %v517
    %v523 = vunpack.c.l.b16 %v518
    %v524 = vunpack.c.h.b16 %v518
    %v525 = vpack.c.b16 %v521, %v521
    %v526 = vpack.c.b16 %v522, %v522
    %v527 = vpack.c.b16 %v523, %v523
    %v528 = vpack.c.b16 %v524, %v524
    %533 = vst [vmem:[#allocation11] sm:$0xf] %v525
    %534 = vst [vmem:[#allocation11 + $0x4] sm:$0xf] %v526
    %535 = vst [vmem:[#allocation11 + $0x8] sm:$0xf] %v527
    %536 = vst [vmem:[#allocation11 + $0xc] sm:$0xf] %v528
    %v537 = vld [vmem:[#allocation11] sm:$0xf]
    %vm538 = vcmask 125952
    %539 = vst.msk [vmem:[#allocation3] sm:$0xf] %vm538, %v537
    %v540 = vld [vmem:[#allocation11 + $0x4] sm:$0xf]
    %542 = vrot.lane.b32.xlu0 %v540, 16
    %v543 = vpop.permute.xlu0 %542
    %vm545 = vcmask 257152
    %546 = vst.msk [vmem:[#allocation3] sm:$0xf] %vm545, %v543
    %v547 = vld [vmem:[#allocation11 + $0x8] sm:$0xf]
    %549 = vrot.lane.b32.xlu0 %v547, 32
    %v550 = vpop.permute.xlu0 %549
    %vm552 = vcmask 388352
    %553 = vst.msk [vmem:[#allocation3] sm:$0xf] %vm552, %v550
    %v554 = vld [vmem:[#allocation11 + $0xc] sm:$0xf]
    %556 = vrot.lane.b32.xlu0 %v554, 48
    %v557 = vpop.permute.xlu0 %556
    %vm559 = vcmask 519552
    %560 = vst.msk [vmem:[#allocation3] sm:$0xf] %vm559, %v557
    %v561 = vld [vmem:[#allocation3] sm:$0xf]
    %v562 = vld [vmem:[#allocation8] sm:$0xf]
    %v563 = vld [vmem:[#allocation8 + $0x4] sm:$0xf]
    %v564 = vld [vmem:[#allocation8 + $0x8] sm:$0xf]
    %v565 = vld [vmem:[#allocation8 + $0xc] sm:$0xf]
    %v566 = vld [vmem:[#allocation8 + $0x10] sm:$0xf]
    %v567 = vld [vmem:[#allocation8 + $0x14] sm:$0xf]
    %v568 = vld [vmem:[#allocation8 + $0x18] sm:$0xf]
    %v569 = vld [vmem:[#allocation8 + $0x1c] sm:$0xf]
    %v570 = vld [vmem:[%s5 + $0x2] sm:$0x1]
    %v571 = vlaneseq
    %v572 = vshrl.u32 %v571, 7
    %v573 = vsub.s32 0, %v572
    %v574 = vrot.slane %v570, %v573
    %v583 = vunpack.c.l.b16 %v562
    %v584 = vunpack.c.l.b16 %v563
    %v585 = vunpack.c.l.b16 %v564
    %v586 = vunpack.c.l.b16 %v565
    %v587 = vunpack.c.l.b16 %v566
    %v588 = vunpack.c.l.b16 %v567
    %v589 = vunpack.c.l.b16 %v568
    %v590 = vunpack.c.l.b16 %v569
    %v591 = vpack.c.b16 %v584, %v583
    %v592 = vpack.c.b16 %v586, %v585
    %v593 = vpack.c.b16 %v588, %v587
    %v594 = vpack.c.b16 %v590, %v589
    %vm599 = vcmask 523264
    %v601 = vsel %vm599, %v561, 0
    %603 = vmatprep.subr.bf16.mxu0 0
    %604 = vmatpush1.bf16.msra.mxu0 %v591
    %605 = vmatprep.subr.bf16.mxu0 0
    %606 = vmatpush1.bf16.msra.mxu0 %v592
    %607 = vmatprep.subr.bf16.mxu0 0
    %608 = vmatpush1.bf16.msra.mxu0 %v593
    %609 = vmatprep.subr.bf16.mxu0 0
    %610 = vmatpush1.bf16.msra.mxu0 %v594
    %611 = vmatprep.subr.bf16.mxu0 0
    %612 = vmatpush1.bf16.msra.mxu0 0
    %613 = vmatprep.subr.bf16.mxu0 0
    %614 = vmatpush1.bf16.msra.mxu0 0
    %615 = vmatprep.subr.bf16.mxu0 0
    %616 = vmatpush1.bf16.msra.mxu0 0
    %617 = vmatprep.subr.bf16.mxu0 0
    %618 = vmatpush1.bf16.msra.mxu0 0
    %619 = vmatprep.subr.bf16.mxu0 0
    %620 = vmatpush1.bf16.msra.mxu0 0
    %621 = vmatprep.subr.bf16.mxu0 0
    %622 = vmatpush1.bf16.msra.mxu0 0
    %623 = vmatprep.subr.bf16.mxu0 0
    %624 = vmatpush1.bf16.msra.mxu0 0
    %625 = vmatprep.subr.bf16.mxu0 0
    %626 = vmatpush1.bf16.msra.mxu0 0
    %627 = vmatprep.subr.bf16.mxu0 0
    %628 = vmatpush1.bf16.msra.mxu0 0
    %629 = vmatprep.subr.bf16.mxu0 0
    %630 = vmatpush1.bf16.msra.mxu0 0
    %631 = vmatprep.subr.bf16.mxu0 0
    %632 = vmatpush1.bf16.msra.mxu0 0
    %633 = vmatprep.subr.bf16.mxu0 0
    %634 = vmatpush1.bf16.msra.mxu0 0
    %635 = vmatprep.mubr.bf16.mxu0 0
    %636 = vmatmul.mubr.bf16.gmra.mrb[0].mxu0 %v601
    %v637 = vpop.f32.mrb[0].mxu0
    %v638 = vadd.f32 %v574, %v637
    %v639 = vpop.f32.mrb[0].mxu0
    %v640 = vpop.f32.mrb[0].mxu0
    %v641 = vpop.f32.mrb[0].mxu0
    %642 = vdwg.mxu0
    %v643 = vmax.f32 %v638, 0.0
    %v644 = vpack.c.bf16 %v643, %v643
    %645 = vst [vmem:[#allocation13] sm:$0xf] %v644
    %vm646 = vcmask 253952
    %647 = vst.msk [vmem:[#allocation4] sm:$0x1] %vm646, %v644
    %v650 = vunpack.c.l.s4 1966171168
    %v651 = vunpack.c.0.s8 %v650
    %v652 = vlaneseq
    %v653 = vshrl.u32 %v652, 7
    %v654 = vsub.s32 %v651, %v653
    %v655 = vrot.slane %v644, %v654
    %v656 = vcombine.high %v655, %v655
    %v658 = vunpack.c.l.s4 1966171168
    %v659 = vunpack.c.0.s8 %v658
    %v660 = vlaneseq
    %v661 = vshrl.u32 %v660, 7
    %v662 = vsub.s32 %v659, %v661
    %v663 = vrot.slane %v655, %v662
    %v665 = vunpack.c.l.s4 1966171168
    %v666 = vunpack.c.0.s8 %v665
    %v667 = vlaneseq
    %v668 = vshrl.u32 %v667, 7
    %v669 = vsub.s32 %v666, %v668
    %v670 = vrot.slane %v656, %v669
    %671 = vrot.lane.b32.xlu0 %v670, 32
    %v672 = vpop.permute.xlu0 %671
    %vm674 = vcmask 516352
    %675 = vst.msk [vmem:[#allocation4] sm:$0x1] %vm674, %v672
    %v676 = vcombine.high %v663, %v663
    %677 = vrot.lane.b32.xlu0 %v676, 64
    %v678 = vpop.permute.xlu0 %677
    %vm680 = vcmask 778752
    %681 = vst.msk [vmem:[#allocation4] sm:$0x1] %vm680, %v678
    %v682 = vcombine.high %v670, %v670
    %683 = vrot.lane.b32.xlu0 %v682, 96
    %v684 = vpop.permute.xlu0 %683
    %vm686 = vcmask 1041152
    %687 = vst.msk [vmem:[#allocation4] sm:$0x1] %vm686, %v684
    %v688 = vld [vmem:[#allocation4] sm:$0x1]
    %v689 = vld [vmem:[%s4] sm:$0xf]
    %v690 = vld [vmem:[%s4 + $0x4] sm:$0xf]
    %v691 = vld [vmem:[%s4 + $0x8] sm:$0xf]
    %v692 = vld [vmem:[%s4 + $0xc] sm:$0xf]
    %v693 = vld [vmem:[%s4 + $0x10] sm:$0xf]
    %v694 = vld [vmem:[%s4 + $0x14] sm:$0xf]
    %v695 = vld [vmem:[%s4 + $0x18] sm:$0xf]
    %v696 = vld [vmem:[%s4 + $0x1c] sm:$0xf]
    %v697 = vld [vmem:[%s4 + $0x20] sm:$0xf]
    %v698 = vld [vmem:[%s4 + $0x24] sm:$0xf]
    %v699 = vld [vmem:[%s4 + $0x28] sm:$0xf]
    %v700 = vld [vmem:[%s4 + $0x2c] sm:$0xf]
    %v701 = vld [vmem:[%s4 + $0x30] sm:$0xf]
    %v702 = vld [vmem:[%s4 + $0x34] sm:$0xf]
    %v703 = vld [vmem:[%s4 + $0x38] sm:$0xf]
    %v704 = vld [vmem:[%s4 + $0x3c] sm:$0xf]
    %v705 = vld [vmem:[%s5 + $0x3] sm:$0x1]
    %v706 = vlaneseq
    %v707 = vshrl.u32 %v706, 7
    %v708 = vsub.s32 0, %v707
    %v709 = vrot.slane %v705, %v708
    %v726 = vunpack.c.l.b16 %v689
    %v727 = vunpack.c.l.b16 %v690
    %v728 = vunpack.c.l.b16 %v691
    %v729 = vunpack.c.l.b16 %v692
    %v730 = vunpack.c.l.b16 %v693
    %v731 = vunpack.c.l.b16 %v694
    %v732 = vunpack.c.l.b16 %v695
    %v733 = vunpack.c.l.b16 %v696
    %v734 = vunpack.c.l.b16 %v697
    %v735 = vunpack.c.l.b16 %v698
    %v736 = vunpack.c.l.b16 %v699
    %v737 = vunpack.c.l.b16 %v700
    %v738 = vunpack.c.l.b16 %v701
    %v739 = vunpack.c.l.b16 %v702
    %v740 = vunpack.c.l.b16 %v703
    %v741 = vunpack.c.l.b16 %v704
    %v742 = vpack.c.b16 %v727, %v726
    %v743 = vpack.c.b16 %v729, %v728
    %v744 = vpack.c.b16 %v731, %v730
    %v745 = vpack.c.b16 %v733, %v732
    %v746 = vpack.c.b16 %v735, %v734
    %v747 = vpack.c.b16 %v737, %v736
    %v748 = vpack.c.b16 %v739, %v738
    %v749 = vpack.c.b16 %v741, %v740
    %758 = vmatprep.subr.bf16.mxu0 0
    %759 = vmatpush1.bf16.msra.mxu0 %v742
    %760 = vmatprep.subr.bf16.mxu0 0
    %761 = vmatpush1.bf16.msra.mxu0 %v743
    %762 = vmatprep.subr.bf16.mxu0 0
    %763 = vmatpush1.bf16.msra.mxu0 %v744
    %764 = vmatprep.subr.bf16.mxu0 0
    %765 = vmatpush1.bf16.msra.mxu0 %v745
    %766 = vmatprep.subr.bf16.mxu0 0
    %767 = vmatpush1.bf16.msra.mxu0 %v746
    %768 = vmatprep.subr.bf16.mxu0 0
    %769 = vmatpush1.bf16.msra.mxu0 %v747
    %770 = vmatprep.subr.bf16.mxu0 0
    %771 = vmatpush1.bf16.msra.mxu0 %v748
    %772 = vmatprep.subr.bf16.mxu0 0
    %773 = vmatpush1.bf16.msra.mxu0 %v749
    %774 = vmatprep.subr.bf16.mxu0 0
    %775 = vmatpush1.bf16.msra.mxu0 0
    %776 = vmatprep.subr.bf16.mxu0 0
    %777 = vmatpush1.bf16.msra.mxu0 0
    %778 = vmatprep.subr.bf16.mxu0 0
    %779 = vmatpush1.bf16.msra.mxu0 0
    %780 = vmatprep.subr.bf16.mxu0 0
    %781 = vmatpush1.bf16.msra.mxu0 0
    %782 = vmatprep.subr.bf16.mxu0 0
    %783 = vmatpush1.bf16.msra.mxu0 0
    %784 = vmatprep.subr.bf16.mxu0 0
    %785 = vmatpush1.bf16.msra.mxu0 0
    %786 = vmatprep.subr.bf16.mxu0 0
    %787 = vmatpush1.bf16.msra.mxu0 0
    %788 = vmatprep.subr.bf16.mxu0 0
    %789 = vmatpush1.bf16.msra.mxu0 0
    %790 = vmatprep.mubr.bf16.mxu0 0
    %791 = vmatmul.mubr.bf16.gmra.mrb[0].mxu0 %v688
    %v792 = vpop.f32.mrb[0].mxu0
    %v793 = vadd.f32 %v709, %v792
    %v794 = vpop.f32.mrb[0].mxu0
    %v795 = vpop.f32.mrb[0].mxu0
    %v796 = vpop.f32.mrb[0].mxu0
    %797 = vdwg.mxu0
    %v798 = vmax.f32 %v793, 0.0
    %v799 = vpack.c.bf16 %v798, %v798
    %800 = vst [vmem:[#allocation14] sm:$0x1] %v799
    // Predicated region
    $region34: #{tpu_custom_call.1} parent=1 // pred_check
      _
    $region35: #{tpu_custom_call.1} parent=1 // pred_check_branch
      %802 = sbr.rel (0) target = $region37
    $region36: #{tpu_custom_call.1} parent=1 // pred_region
      %s804 = ssub.s32 1024, 1024
      %805 = vsyncadd [#allocation7], %s804
      %s806 = sshll.u32 [#allocation10], 4
      %s807 = int_to_ptr.vmem [resolvable:$true] %s806
      %812 = dma.vmem_to_hbm [thread:$0]  %s807, 1024, %s6, [#allocation7], 64, 64, 4
    $region37: #{tpu_custom_call.1} parent=1 // pred_fallthru
      _
    // Predicated region
    $region38: #{tpu_custom_call.1} parent=1 // pred_check
      _
    $region39: #{tpu_custom_call.1} parent=1 // pred_check_branch
      %814 = sbr.rel (0) target = $region41
    $region40: #{tpu_custom_call.1} parent=1 // pred_region
      %s816 = ssub.s32 256, 256
      %817 = vsyncadd [#allocation12], %s816
      %s818 = sshll.u32 [#allocation11], 4
      %s819 = int_to_ptr.vmem [resolvable:$true] %s818
      %824 = dma.vmem_to_hbm [thread:$0]  %s819, 256, %s7, [#allocation12], 64, 64, 4
    $region41: #{tpu_custom_call.1} parent=1 // pred_fallthru
      _
    // Predicated region
    $region42: #{tpu_custom_call.1} parent=1 // pred_check
      _
    $region43: #{tpu_custom_call.1} parent=1 // pred_check_branch
      %826 = sbr.rel (0) target = $region45
    $region44: #{tpu_custom_call.1} parent=1 // pred_region
      %s828 = ssub.s32 64, 64
      %829 = vsyncadd [#allocation12], %s828
      %s831 = sshll.u32 [#allocation13], 4
      %s832 = int_to_ptr.vmem [resolvable:$true] %s831
      %834 = dma.vmem_to_hbm [thread:$0]  %s832, 64, %s8, [#allocation12]
    $region45: #{tpu_custom_call.1} parent=1 // pred_fallthru
      _
    // Predicated region
    $region46: #{tpu_custom_call.1} parent=1 // pred_check
      _
    $region47: #{tpu_custom_call.1} parent=1 // pred_check_branch
      %836 = sbr.rel (0) target = $region49
    $region48: #{tpu_custom_call.1} parent=1 // pred_region
      %s838 = ssub.s32 16, 16
      %839 = vsyncadd [#allocation15], %s838
      %s841 = sshll.u32 [#allocation14], 4
      %s842 = int_to_ptr.vmem [resolvable:$true] %s841
      %844 = dma.vmem_to_hbm [thread:$0]  %s842, 16, %s9, [#allocation15]
    $region49: #{tpu_custom_call.1} parent=1 // pred_fallthru
      _
    // Predicated region
    $region50: #{tpu_custom_call.1} parent=1 // pred_check
      _
    $region51: #{tpu_custom_call.1} parent=1 // pred_check_branch
      %846 = sbr.rel (0) target = $region53
    $region52: #{tpu_custom_call.1} parent=1 // pred_region
      %847 = dma.done [#allocation7], 1024
    $region53: #{tpu_custom_call.1} parent=1 // pred_fallthru
      _
    // Predicated region
    $region54: #{tpu_custom_call.1} parent=1 // pred_check
      _
    $region55: #{tpu_custom_call.1} parent=1 // pred_check_branch
      %849 = sbr.rel (0) target = $region57
    $region56: #{tpu_custom_call.1} parent=1 // pred_region
      %850 = dma.done [#allocation12], 256
    $region57: #{tpu_custom_call.1} parent=1 // pred_fallthru
      _
    // Predicated region
    $region58: #{tpu_custom_call.1} parent=1 // pred_check
      _
    $region59: #{tpu_custom_call.1} parent=1 // pred_check_branch
      %852 = sbr.rel (0) target = $region61
    $region60: #{tpu_custom_call.1} parent=1 // pred_region
      %853 = dma.done [#allocation12], 64
    $region61: #{tpu_custom_call.1} parent=1 // pred_fallthru
      _
    // Predicated region
    $region62: #{tpu_custom_call.1} parent=1 // pred_check
      _
    $region63: #{tpu_custom_call.1} parent=1 // pred_check_branch
      %855 = sbr.rel (0) target = $region65
    $region64: #{tpu_custom_call.1} parent=1 // pred_region
      %856 = dma.done [#allocation15], 16
    $region65: #{tpu_custom_call.1} parent=1 // pred_fallthru
      _
    %857 = vsyncpa [#allocation6], 1
    %858 = vsyncpa [#allocation9], 1
    %859 = vsyncpa [#allocation7], 1
    %860 = vsyncpa [#allocation12], 1
    %861 = vsyncpa [#allocation15], 1

</llo_original>
